<compile_context>
chip_gen: v5e
topology: v5e:2x2
jax: 0.10.0
libtpu: 0.0.40
codegen_flags: <defaults>
</compile_context>

<pallas_src>
import jax
import jax.numpy as jnp
from jax import lax
from jax.experimental import pallas as pl
from jax.experimental.pallas import tpu as pltpu

# ---------------------------------------------------------------------------
# Static model configuration (shapes implied by the module's forward)
# ---------------------------------------------------------------------------
C = 1              # single symbol -> 1 input channel
W = 16             # network.window_size
E = 8              # embedding dim (len(single_embedding))
K1, F1 = 4, 8      # conv1: kernel/stride 4, 8 output channels
K2, F2 = 4, 16     # conv2: kernel/stride 4, 16 output channels
P1 = W // K1       # conv1 output length (= conv2 kernel size K2)
OUT = 3            # head output dim (e.g. mu / sigma / logit params)
assert P1 == K2

HID1 = P1 * F1     # flattened conv1 activations = 32
LANES = 128        # full vreg lane width for all weight operands
OUT_T = 8          # transposed-output sublane rows (OUT padded to 8)

# Packed-parameter buffer layout: one (PR, 128) f32 array, blocks aligned to
# sublane (8-row) boundaries so static slices stay tile-aligned.
R_W1 = 0            # rows [0, 16)    : block-diagonal conv1 weight (W, 128)
R_B1 = 16           # row 16          : tiled conv1 bias (1, 128)
R_W2 = 24           # rows [24, 152)  : flattened conv2 weight (128, 128)
R_B2 = 152          # row 152         : conv2 bias (1, 128)
R_HWT = 160         # rows [160, 168) : head weight TRANSPOSED (8, 128)
R_HB = 168          # rows [168, 176) : fused head bias column (8, 1)
PR = 176            # total rows (multiple of 8)


# ---------------------------------------------------------------------------
# Pallas kernel: full forward pass for one batch tile, transposed output
# ---------------------------------------------------------------------------
def net_kernel(x_ref, p_ref, o_ref):
    x = x_ref[...]                                       # (TB, W)

    w1 = p_ref[R_W1:R_W1 + W, :]                         # (W, 128)  block-diag, padded
    b1 = p_ref[R_B1:R_B1 + 1, :]                         # (1, 128)
    w2 = p_ref[R_W2:R_W2 + LANES, :]                     # (128, 128) padded
    b2 = p_ref[R_B2:R_B2 + 1, :]                         # (1, 128)
    hwT = p_ref[R_HWT:R_HWT + OUT_T, :]                  # (8, 128)  head weight^T, padded
    hbT = p_ref[R_HB:R_HB + OUT_T, 0:1]                  # (8, 1)    fused bias column

    # conv1 (all positions at once via block-diagonal weight) + ReLU
    h1 = jnp.maximum(
        jnp.dot(x, w1, preferred_element_type=jnp.float32) + b1, 0.0)   # (TB, 128)
    # conv2 (single matmul over flattened positions x channels) + ReLU
    h2 = jnp.maximum(
        jnp.dot(h1, w2, preferred_element_type=jnp.float32) + b2, 0.0)  # (TB, 128)
    # head (transposed): out^T[o, b] = sum_f hw^T[o, f] * h2[b, f]  + fused bias
    outT = lax.dot_general(
        hwT, h2,
        dimension_numbers=(((1,), (1,)), ((), ())),
        preferred_element_type=jnp.float32) + hbT                       # (8, TB)
    o_ref[...] = outT.astype(o_ref.dtype)


# ---------------------------------------------------------------------------
# Parameter packing (runs ONCE at model construction, not per call)
# ---------------------------------------------------------------------------
def pack_params(params, single_embedding):
    w1, b1, w2, b2, hw_feat, hw_emb, hb = params

    # Block-diagonal conv1 weight, zero-padded to 128 lanes.
    w1_bd = jnp.zeros((W, LANES), jnp.float32)
    for p in range(P1):
        w1_bd = w1_bd.at[p * K1:(p + 1) * K1, p * F1:(p + 1) * F1].set(w1)
    b1_row = jnp.zeros((LANES,), jnp.float32).at[0:HID1].set(
        jnp.tile(b1[0], P1))                                    # (128,)

    # Flattened conv2 weight W2f[p*F1 + f1, f2] = w2[p, f1, f2], padded to 128x128.
    w2_full = jnp.zeros((LANES, LANES), jnp.float32).at[0:HID1, 0:F2].set(
        w2.reshape(HID1, F2))
    b2_row = jnp.zeros((LANES,), jnp.float32).at[0:F2].set(b2[0])

    # Head weight transposed (OUT, F2), zero-padded to (8, 128).
    hw_t = jnp.zeros((OUT_T, LANES), jnp.float32).at[0:OUT, 0:F2].set(hw_feat.T)

    # Fold the constant embedding into the head bias: emb @ We + b  -> (OUT,)
    fused_bias = (single_embedding.reshape(1, E) @ hw_emb + hb)[0]

    packed = jnp.zeros((PR, LANES), jnp.float32)
    packed = packed.at[R_W1:R_W1 + W, :].set(w1_bd)
    packed = packed.at[R_B1, :].set(b1_row)
    packed = packed.at[R_W2:R_W2 + LANES, :].set(w2_full)
    packed = packed.at[R_B2, :].set(b2_row)
    packed = packed.at[R_HWT:R_HWT + OUT_T, :].set(hw_t)
    packed = packed.at[R_HB:R_HB + OUT, 0].set(fused_bias)
    return packed


# ---------------------------------------------------------------------------
# Tiling choice: big tiles (amortize per-step overhead) but keep >= 2 tiles
# when batch allows, so v7x can shard the grid across both TensorCores.
# ---------------------------------------------------------------------------
def _choose_tiling(batch):
    b128 = max(128, ((batch + 127) // 128) * 128)
    if b128 == 128:
        return 128, 128
    tb = min(512, b128 // 2)
    tb = max(128, (tb // 128) * 128)         # multiple of 128 (lane-dense out tile)
    bpad = ((b128 + tb - 1) // tb) * tb
    return tb, bpad


# ---------------------------------------------------------------------------
# Forward (pallas_call); packed params are a closed-over constant
# ---------------------------------------------------------------------------
def _pallas_forward(window, packed):
    Bn = window.shape[0]
    x = window.reshape(Bn, C * W).astype(jnp.float32)      # (B, W)

    TB, Bpad = _choose_tiling(Bn)
    if Bpad != Bn:
        x = jnp.pad(x, ((0, Bpad - Bn), (0, 0)))           # only when needed

    flops = 2 * Bpad * (W * LANES + LANES * LANES + LANES * OUT_T)
    bytes_accessed = 4 * (Bpad * W + PR * LANES + OUT_T * Bpad)

    out_t = pl.pallas_call(
        net_kernel,
        out_shape=jax.ShapeDtypeStruct((OUT_T, Bpad), jnp.float32),
        grid_spec=pltpu.PrefetchScalarGridSpec(
            num_scalar_prefetch=0,
            grid=(Bpad // TB,),
            in_specs=[pl.BlockSpec((TB, C * W), lambda i: (i, 0)),
                      pl.BlockSpec((PR, LANES), lambda i: (0, 0))],
            out_specs=pl.BlockSpec((OUT_T, TB), lambda i: (0, i)),
        ),
        compiler_params=pltpu.CompilerParams(
            dimension_semantics=("parallel",)),
        cost_estimate=pl.CostEstimate(
            flops=flops, transcendentals=0, bytes_accessed=bytes_accessed),
    )(x, packed)

    return out_t[:OUT, :Bn].T                               # (B, OUT)


def make_single_symbol_model(params, single_embedding):
    """Mirror of SingleSymbolModelFromEmbedding: embedding/network fixed at
    construction; returns a jitted forward(window) -> (B, OUT)."""
    packed = jax.device_put(pack_params(params, single_embedding))

    @jax.jit
    def forward(window):
        return _pallas_forward(window, packed)

    return forward


# ---------------------------------------------------------------------------
# Deterministic synthetic parameters + pure-JAX reference (for verification)
# ---------------------------------------------------------------------------
def init_params(key):
    ks = jax.random.split(key, 7)
    scale = 0.1
    w1 = scale * jax.random.normal(ks[0], (C * K1, F1), jnp.float32)
    b1 = scale * jax.random.normal(ks[1], (1, F1), jnp.float32)
    w2 = scale * jax.random.normal(ks[2], (K2, F1, F2), jnp.float32)
    b2 = scale * jax.random.normal(ks[3], (1, F2), jnp.float32)
    hw_feat = scale * jax.random.normal(ks[4], (F2, OUT), jnp.float32)
    hw_emb = scale * jax.random.normal(ks[5], (E, OUT), jnp.float32)
    hb = scale * jax.random.normal(ks[6], (1, OUT), jnp.float32)
    return (w1, b1, w2, b2, hw_feat, hw_emb, hb)


def reference_forward(window, single_embedding, params):
    w1, b1, w2, b2, hw_feat, hw_emb, hb = params
    Bn = window.shape[0]
    emb = jnp.broadcast_to(single_embedding.reshape(1, E), (Bn, E))
    acc = jnp.zeros((Bn, F2), jnp.float32)
    for p in range(P1):
        patch = window[:, :, p * K1:(p + 1) * K1].reshape(Bn, C * K1)
        h1 = jnp.maximum(patch @ w1 + b1, 0.0)
        acc = acc + h1 @ w2[p]
    h2 = jnp.maximum(acc + b2, 0.0)
    return h2 @ hw_feat + emb @ hw_emb + hb


if __name__ == "__main__":
    key = jax.random.PRNGKey(0)
    k_win, k_emb, k_par, k_win2 = jax.random.split(key, 4)

    single_embedding = jax.random.normal(k_emb, (E,), jnp.float32)
    params = init_params(k_par)
    model = make_single_symbol_model(params, single_embedding)

    # Tile-aligned batch (grid of 2 parallel tiles).
    B = 256
    window = jax.random.normal(k_win, (B, C, W), jnp.float32)      # NCW
    out = jax.block_until_ready(model(window))
    assert out.shape == (B, OUT) and out.dtype == jnp.float32
    ref = reference_forward(window, single_embedding, params)
    assert jnp.allclose(out, ref, rtol=1e-3, atol=1e-4)

    # Non-tile-aligned batch exercises the padding path.
    B2 = 100
    window2 = jax.random.normal(k_win2, (B2, C, W), jnp.float32)
    out2 = jax.block_until_ready(model(window2))
    assert out2.shape == (B2, OUT)
    ref2 = reference_forward(window2, single_embedding, params)
    assert jnp.allclose(out2, ref2, rtol=1e-3, atol=1e-4)

    print("KERNEL_OK")
</pallas_src>

<mosaic_0001>
module attributes {stable_mosaic.version = 11 : i64} {
  func.func @net_kernel(%arg0: i32, %arg1: memref<128x16xf32, #tpu.memory_space<vmem>>, %arg2: memref<176x128xf32, #tpu.memory_space<vmem>>, %arg3: memref<8x128xf32, #tpu.memory_space<vmem>>) attributes {dimension_semantics = [#tpu.dimension_semantics<parallel>], iteration_bounds = array<i64: 2>, scalar_prefetch = 0 : i64, scratch_operands = 0 : i64, tpu.core_type = #tpu.core_type<tc>, window_params = [{transform_indices = @transform_0, window_bounds = array<i64: 128, 16>}, {pipeline_mode = #tpu.pipeline_mode<synchronous>, transform_indices = @transform_1, window_bounds = array<i64: 176, 128>}, {transform_indices = @transform_2, window_bounds = array<i64: 8, 128>}]} {
    %c0 = arith.constant 0 : index
    %c0_0 = arith.constant 0 : index
    %0 = vector.load %arg1[%c0, %c0_0] : memref<128x16xf32, #tpu.memory_space<vmem>>, vector<128x16xf32>
    %c0_1 = arith.constant 0 : index
    %c0_2 = arith.constant 0 : index
    %1 = vector.load %arg2[%c0_1, %c0_2] : memref<176x128xf32, #tpu.memory_space<vmem>>, vector<16x128xf32>
    %c16 = arith.constant 16 : index
    %c0_3 = arith.constant 0 : index
    %2 = vector.load %arg2[%c16, %c0_3] : memref<176x128xf32, #tpu.memory_space<vmem>>, vector<1x128xf32>
    %c24 = arith.constant 24 : index
    %c0_4 = arith.constant 0 : index
    %3 = vector.load %arg2[%c24, %c0_4] : memref<176x128xf32, #tpu.memory_space<vmem>>, vector<128x128xf32>
    %c152 = arith.constant 152 : index
    %c0_5 = arith.constant 0 : index
    %4 = vector.load %arg2[%c152, %c0_5] : memref<176x128xf32, #tpu.memory_space<vmem>>, vector<1x128xf32>
    %c160 = arith.constant 160 : index
    %c0_6 = arith.constant 0 : index
    %5 = vector.load %arg2[%c160, %c0_6] : memref<176x128xf32, #tpu.memory_space<vmem>>, vector<8x128xf32>
    %c168 = arith.constant 168 : index
    %c0_7 = arith.constant 0 : index
    %6 = vector.load %arg2[%c168, %c0_7] : memref<176x128xf32, #tpu.memory_space<vmem>>, vector<8x1xf32>
    %cst = arith.constant dense<0.000000e+00> : vector<128x128xf32>
    %7 = tpu.matmul %0, %1, %cst {dimension_numbers = #tpu.dot_dimension_numbers<[1], [0], [0], [1], [0, 0, 1, 1], [], []>} : vector<128x16xf32>, vector<16x128xf32>, vector<128x128xf32> -> vector<128x128xf32>
    %8 = vector.broadcast %2 : vector<1x128xf32> to vector<128x128xf32>
    %9 = arith.addf %7, %8 : vector<128x128xf32>
    %cst_8 = arith.constant 0.000000e+00 : f32
    %10 = vector.broadcast %cst_8 : f32 to vector<128x128xf32>
    %11 = arith.maximumf %9, %10 : vector<128x128xf32>
    %cst_9 = arith.constant dense<0.000000e+00> : vector<128x128xf32>
    %12 = tpu.matmul %11, %3, %cst_9 {dimension_numbers = #tpu.dot_dimension_numbers<[1], [0], [0], [1], [0, 0, 1, 1], [], []>} : vector<128x128xf32>, vector<128x128xf32>, vector<128x128xf32> -> vector<128x128xf32>
    %13 = vector.broadcast %4 : vector<1x128xf32> to vector<128x128xf32>
    %14 = arith.addf %12, %13 : vector<128x128xf32>
    %cst_10 = arith.constant 0.000000e+00 : f32
    %15 = vector.broadcast %cst_10 : f32 to vector<128x128xf32>
    %16 = arith.maximumf %14, %15 : vector<128x128xf32>
    %cst_11 = arith.constant dense<0.000000e+00> : vector<8x128xf32>
    %17 = tpu.matmul %5, %16, %cst_11 {dimension_numbers = #tpu.dot_dimension_numbers<[1], [1], [0], [0], [0, 0, 1, 0], [], []>} : vector<8x128xf32>, vector<128x128xf32>, vector<8x128xf32> -> vector<8x128xf32>
    %18 = vector.broadcast %6 : vector<8x1xf32> to vector<8x128xf32>
    %19 = arith.addf %17, %18 : vector<8x128xf32>
    %c0_12 = arith.constant 0 : index
    %c0_13 = arith.constant 0 : index
    %20 = vector.load %arg3[%c0_12, %c0_13] : memref<8x128xf32, #tpu.memory_space<vmem>>, vector<8x128xf32>
    tpu.vector_store %arg3[%c0_12, %c0_13], %19 {strides = array<i32>} : memref<8x128xf32, #tpu.memory_space<vmem>>, vector<8x128xf32>,
    return
  }
  func.func @transform_0(%arg0: i32) -> (i32, i32) {
    %c0_i32 = arith.constant 0 : i32
    %c0_i32_0 = arith.constant 0 : i32
    return %arg0, %c0_i32 : i32, i32
  }
  func.func @transform_1(%arg0: i32) -> (i32, i32) {
    %c0_i32 = arith.constant 0 : i32
    %c0_i32_0 = arith.constant 0 : i32
    %c0_i32_1 = arith.constant 0 : i32
    return %c0_i32, %c0_i32_0 : i32, i32
  }
  func.func @transform_2(%arg0: i32) -> (i32, i32) {
    %c0_i32 = arith.constant 0 : i32
    %c0_i32_0 = arith.constant 0 : i32
    return %c0_i32, %arg0 : i32, i32
  }
}

</mosaic_0001>

<llo_original>
// kernel: forward.1
$region0: #{forward.1}
  #allocation0 [shape = 'u32[]', space=smem, size = 0x4, offset = 0x4, fixed_abs, tag = 'smem constant byte address 0x4 - core index']
  #allocation1 [shape = 'u32[72,128]{1,0:T(1,128)}', space=vmem, size = 0x9000, scoped, tag = 'internal scratch']
  %s0 = inlined_call_operand.vmem [shape: f32[256,16], index: 0, kind: input, shape index: {}]
  %s1 = inlined_call_operand.vmem [shape: f32[176,128], index: 1, kind: input, shape index: {}]
  %s2 = inlined_call_operand.vmem [shape: f32[8,256], index: 2, kind: output, shape index: {}]
  %s3 = sld [smem:[#allocation0]]
  $region41: #{forward.1} parent=0
    _
  %s5 = ssub.s32 1, %s3
  %s6 = scalar_select 0, %s5, %s3
  loop: start=0, step=1, limit=4
  $region2: #{forward.1} parent=0 // loop_pre_header
    _
  $region3: #{forward.1} parent=0 // loop_header
    %s8 = sphi 0, %s12
    %p9 = scmp.ge.s32.totalorder %s8, 4
    %s18 = sphi 0, %s20
    %s21 = sphi 0, %s18
    %s22 = sphi 0, %s21
    %s38 = sphi 0, %s22
    %s42 = sphi 0, %s42
    %s44 = sphi 0, %s42
    %s45 = sphi 0, %s44
    %s59 = sphi 0, %s45
    %s65 = sphi 0, %s67
    %s68 = sphi 0, %s65
    %s69 = sphi 0, %s68
    %s85 = sphi 0, %s69
  $region4: #{forward.1} parent=0 // loop_header_branch
    %11 = sbr.rel (%p9) target = $region8
  $region5: #{forward.1} parent=0 // loop_body
    %s13 = ssub.s32 %s8, 1
    %s14 = ssub.s32 %s8, 2
    %s15 = sadd.s32 %s8, 1
    %s16 = ssub.s32 %s8, %s15
    %p17 = scmp.eq.s32.totalorder %s16, 0
    %s19 = sadd.s32 %s18, 1
    %s20 = scalar_select %p17, %s18, %s19
    %p23 = pneg %p17
    %p24 = scmp.eq.s32.totalorder %s8, 1
    %p25 = por %p23, %p24
    %p26 = scmp.ne.s32.totalorder %s18, %s21
    %p27 = scmp.eq.s32.totalorder %s8, 0
    %p28 = por %p26, %p27
    %p29 = scmp.ne.s32.totalorder %s18, %s21
    %p30 = scmp.eq.s32.totalorder %s13, 1
    %p31 = por %p29, %p30
    %p32 = scmp.ne.s32.totalorder %s21, %s22
    %p33 = scmp.eq.s32.totalorder %s13, 0
    %p34 = por %p32, %p33
    %p35 = scmp.ne.s32.totalorder %s21, %s22
    %p36 = scmp.eq.s32.totalorder %s14, 1
    %p37 = por %p35, %p36
    %p39 = scmp.ne.s32.totalorder %s22, %s38
    %p40 = scmp.eq.s32.totalorder %s14, 0
    %p41 = por %p39, %p40
    %s43 = sadd.s32 %s42, 1
    %p46 = scmp.eq.s32.totalorder %s8, 1
    %p47 = scmp.ne.s32.totalorder %s42, %s44
    %p48 = scmp.eq.s32.totalorder %s8, 0
    %p49 = por %p47, %p48
    %p50 = scmp.ne.s32.totalorder %s42, %s44
    %p51 = scmp.eq.s32.totalorder %s13, 1
    %p52 = por %p50, %p51
    %p53 = scmp.ne.s32.totalorder %s44, %s45
    %p54 = scmp.eq.s32.totalorder %s13, 0
    %p55 = por %p53, %p54
    %p56 = scmp.ne.s32.totalorder %s44, %s45
    %p57 = scmp.eq.s32.totalorder %s14, 1
    %p58 = por %p56, %p57
    %p60 = scmp.ne.s32.totalorder %s45, %s59
    %p61 = scmp.eq.s32.totalorder %s14, 0
    %p62 = por %p60, %p61
    %s63 = ssub.s32 %s8, %s15
    %p64 = scmp.eq.s32.totalorder %s63, 0
    %s66 = sadd.s32 %s65, 1
    %s67 = scalar_select %p64, %s65, %s66
    %p70 = pneg %p64
    %p71 = scmp.eq.s32.totalorder %s8, 1
    %p72 = por %p70, %p71
    %p73 = scmp.ne.s32.totalorder %s65, %s68
    %p74 = scmp.eq.s32.totalorder %s8, 0
    %p75 = por %p73, %p74
    %p76 = scmp.ne.s32.totalorder %s65, %s68
    %p77 = scmp.eq.s32.totalorder %s13, 1
    %p78 = por %p76, %p77
    %p79 = scmp.ne.s32.totalorder %s68, %s69
    %p80 = scmp.eq.s32.totalorder %s13, 0
    %p81 = por %p79, %p80
    %p82 = scmp.ne.s32.totalorder %s68, %s69
    %p83 = scmp.eq.s32.totalorder %s14, 1
    %p84 = por %p82, %p83
    %p86 = scmp.ne.s32.totalorder %s69, %s85
    %p87 = scmp.eq.s32.totalorder %s14, 0
    %p88 = por %p86, %p87
    %p89 = scmp.le.s32.totalorder 1, %s8
    %p90 = scmp.lt.s32.totalorder %s8, 3
    %p91 = pnand %p89, %p90
    %p92 = pneg %p91
    // Predicated region
    $region9: #{forward.1} parent=5 // pred_check
      _
    $region10: #{forward.1} parent=5 // pred_check_branch
      %94 = sbr.rel (%p91) target = $region12
    $region11: #{forward.1} parent=5 // pred_region
      %s95 = ssub.s32 %s8, 1
      // Predicated region
      $region13: #{forward.1} parent=11 // pred_check
        %p96 = pneg %p55
      $region14: #{forward.1} parent=11 // pred_check_branch
        %98 = sbr.rel (%p96) target = $region16
      $region15: #{forward.1} parent=11 // pred_region
        _
      $region16: #{forward.1} parent=11 // pred_fallthru
        _
    $region12: #{forward.1} parent=5 // pred_fallthru
      _
    %p99 = scmp.lt.s32.totalorder %s8, 2
    // Predicated region
    $region17: #{forward.1} parent=5 // pred_check
      %p100 = pneg %p99
    $region18: #{forward.1} parent=5 // pred_check_branch
      %102 = sbr.rel (%p100) target = $region20
    $region19: #{forward.1} parent=5 // pred_region
      // Predicated region
      $region21: #{forward.1} parent=19 // pred_check
        %p103 = pneg %p28
      $region22: #{forward.1} parent=19 // pred_check_branch
        %105 = sbr.rel (%p103) target = $region24
      $region23: #{forward.1} parent=19 // pred_region
        %s106 = smul.u32 16, %s8
        %p107 = scmp.lt.s32.totalorder %s106, 31
        %s108 = scalar_select %p107, %s106, 31
        %s109 = smul.addr %s108, 8
        %s110 = scalar_lea.vmem %s0, %s109
        %s111 = smul.u32 16, %s8
      $region24: #{forward.1} parent=19 // pred_fallthru
        _
    $region20: #{forward.1} parent=5 // pred_fallthru
      _
    %p112 = scmp.le.s32.totalorder 1, %s8
    %p113 = scmp.lt.s32.totalorder %s8, 3
    %p114 = pnand %p112, %p113
    %p115 = pneg %p114
    // Predicated region
    $region25: #{forward.1} parent=5 // pred_check
      _
    $region26: #{forward.1} parent=5 // pred_check_branch
      %117 = sbr.rel (%p114) target = $region28
    $region27: #{forward.1} parent=5 // pred_region
      %s118 = ssub.s32 %s8, 1
      %s119 = smul.u32 16, %s13
      %p120 = scmp.lt.s32.totalorder %s119, 31
      %s121 = scalar_select %p120, %s119, 31
      %s122 = smul.addr %s121, 8
      %s123 = scalar_lea.vmem %s0, %s122
      %p124 = pneg %p34
      %p125 = pneg %p31
      %p126 = pneg %p55
      %p127 = pneg %p52
      %p128 = pneg %p81
      %p129 = pneg %p78
      %p130 = scmp.lt.s32.totalorder %s13, 1
      %s131 = scalar_select %p130, %s13, 1
      %s132 = smul.addr %s131, 8
      %s133 = scalar_lea.vmem %s2, %s132
      %s134 = smul.u32 16, %s13
      %p135 = scmp.lt.s32.totalorder %s134, 31
      %s136 = scalar_select %p135, %s134, 31
      %s137 = smul.addr %s136, 8
      %s138 = scalar_lea.vmem %s0, %s137
      %s139 = smul.u32 16, %s13
      %p140 = scmp.lt.s32.totalorder %s13, 1
      %s141 = scalar_select %p140, %s13, 1
      %s142 = smul.addr %s141, 8
      %s143 = scalar_lea.vmem %s2, %s142
      %v144 = vld [vmem:[%s138] sm:$0xff]
      %v145 = vld [vmem:[%s138 + $0x8] sm:$0xff]
      %v146 = vld [vmem:[%s138 + $0x10] sm:$0xff]
      %v147 = vld [vmem:[%s138 + $0x18] sm:$0xff]
      %v148 = vld [vmem:[%s138 + $0x20] sm:$0xff]
      %v149 = vld [vmem:[%s138 + $0x28] sm:$0xff]
      %v150 = vld [vmem:[%s138 + $0x30] sm:$0xff]
      %v151 = vld [vmem:[%s138 + $0x38] sm:$0xff]
      %v152 = vld [vmem:[%s138 + $0x40] sm:$0xff]
      %v153 = vld [vmem:[%s138 + $0x48] sm:$0xff]
      %v154 = vld [vmem:[%s138 + $0x50] sm:$0xff]
      %v155 = vld [vmem:[%s138 + $0x58] sm:$0xff]
      %v156 = vld [vmem:[%s138 + $0x60] sm:$0xff]
      %v157 = vld [vmem:[%s138 + $0x68] sm:$0xff]
      %v158 = vld [vmem:[%s138 + $0x70] sm:$0xff]
      %v159 = vld [vmem:[%s138 + $0x78] sm:$0xff]
      %v160 = vld [vmem:[%s1] sm:$0xff]
      %v161 = vld [vmem:[%s1 + $0x8] sm:$0xff]
      %v162 = vld [vmem:[%s1 + $0x10] sm:$0x1]
      %v163 = vld [vmem:[%s1 + $0x18] sm:$0xff]
      %v164 = vld [vmem:[%s1 + $0x20] sm:$0xff]
      %v165 = vld [vmem:[%s1 + $0x28] sm:$0xff]
      %v166 = vld [vmem:[%s1 + $0x30] sm:$0xff]
      %v167 = vld [vmem:[%s1 + $0x38] sm:$0xff]
      %v168 = vld [vmem:[%s1 + $0x40] sm:$0xff]
      %v169 = vld [vmem:[%s1 + $0x48] sm:$0xff]
      %v170 = vld [vmem:[%s1 + $0x50] sm:$0xff]
      %v171 = vld [vmem:[%s1 + $0x58] sm:$0xff]
      %v172 = vld [vmem:[%s1 + $0x60] sm:$0xff]
      %v173 = vld [vmem:[%s1 + $0x68] sm:$0xff]
      %v174 = vld [vmem:[%s1 + $0x70] sm:$0xff]
      %v175 = vld [vmem:[%s1 + $0x78] sm:$0xff]
      %v176 = vld [vmem:[%s1 + $0x80] sm:$0xff]
      %v177 = vld [vmem:[%s1 + $0x88] sm:$0xff]
      %v178 = vld [vmem:[%s1 + $0x90] sm:$0xff]
      %v179 = vld [vmem:[%s1 + $0x98] sm:$0x1]
      %v180 = vld [vmem:[%s1 + $0xa0] sm:$0xff]
      %v181 = vld [vmem:[%s1 + $0xa8] sm:$0xff]
      %v182 = vperm.slane %v162, 0
      %vm183 = vcmask 130048
      %v185 = vsel %vm183, %v144, 0
      %v188 = vsel %vm183, %v145, 0
      %v191 = vsel %vm183, %v146, 0
      %v194 = vsel %vm183, %v147, 0
      %v197 = vsel %vm183, %v148, 0
      %v200 = vsel %vm183, %v149, 0
      %v203 = vsel %vm183, %v150, 0
      %v206 = vsel %vm183, %v151, 0
      %v209 = vsel %vm183, %v152, 0
      %v212 = vsel %vm183, %v153, 0
      %v215 = vsel %vm183, %v154, 0
      %v218 = vsel %vm183, %v155, 0
      %v221 = vsel %vm183, %v156, 0
      %v224 = vsel %vm183, %v157, 0
      %v227 = vsel %vm183, %v158, 0
      %v230 = vsel %vm183, %v159, 0
      %232 = vmatpush.msra.mxu0 0.0
      %233 = vmatpush.msra.mxu0 0.0
      %234 = vmatpush.msra.mxu0 0.0
      %235 = vmatpush.msra.mxu0 0.0
      %236 = vmatpush.msra.mxu0 0.0
      %237 = vmatpush.msra.mxu0 0.0
      %238 = vmatpush.msra.mxu0 0.0
      %239 = vmatpush.msra.mxu0 0.0
      %240 = vmatpush.msra.mxu0 0.0
      %241 = vmatpush.msra.mxu0 0.0
      %242 = vmatpush.msra.mxu0 0.0
      %243 = vmatpush.msra.mxu0 0.0
      %244 = vmatpush.msra.mxu0 0.0
      %245 = vmatpush.msra.mxu0 0.0
      %246 = vmatpush.msra.mxu0 %v161
      %247 = vmatpush.msra.mxu0 %v160
      %248 = vmatmul.f32.gmra.mxu0 %v185
      %v249 = vpop.f32.mrf.mxu0
      %v250 = vadd.f32 %v182, %v249
      %251 = vmatmul.f32.gmra.mxu0 %v188
      %v252 = vpop.f32.mrf.mxu0
      %v253 = vadd.f32 %v182, %v252
      %254 = vmatmul.f32.gmra.mxu0 %v191
      %v255 = vpop.f32.mrf.mxu0
      %v256 = vadd.f32 %v182, %v255
      %257 = vmatmul.f32.gmra.mxu0 %v194
      %v258 = vpop.f32.mrf.mxu0
      %v259 = vadd.f32 %v182, %v258
      %260 = vmatmul.f32.gmra.mxu0 %v197
      %v261 = vpop.f32.mrf.mxu0
      %v262 = vadd.f32 %v182, %v261
      %263 = vmatmul.f32.gmra.mxu0 %v200
      %v264 = vpop.f32.mrf.mxu0
      %v265 = vadd.f32 %v182, %v264
      %266 = vmatmul.f32.gmra.mxu0 %v203
      %v267 = vpop.f32.mrf.mxu0
      %v268 = vadd.f32 %v182, %v267
      %269 = vmatmul.f32.gmra.mxu0 %v206
      %v270 = vpop.f32.mrf.mxu0
      %v271 = vadd.f32 %v182, %v270
      %272 = vmatmul.f32.gmra.mxu0 %v209
      %v273 = vpop.f32.mrf.mxu0
      %v274 = vadd.f32 %v182, %v273
      %275 = vmatmul.f32.gmra.mxu0 %v212
      %v276 = vpop.f32.mrf.mxu0
      %v277 = vadd.f32 %v182, %v276
      %278 = vmatmul.f32.gmra.mxu0 %v215
      %v279 = vpop.f32.mrf.mxu0
      %v280 = vadd.f32 %v182, %v279
      %281 = vmatmul.f32.gmra.mxu0 %v218
      %v282 = vpop.f32.mrf.mxu0
      %v283 = vadd.f32 %v182, %v282
      %284 = vmatmul.f32.gmra.mxu0 %v221
      %v285 = vpop.f32.mrf.mxu0
      %v286 = vadd.f32 %v182, %v285
      %287 = vmatmul.f32.gmra.mxu0 %v224
      %v288 = vpop.f32.mrf.mxu0
      %v289 = vadd.f32 %v182, %v288
      %290 = vmatmul.f32.gmra.mxu0 %v227
      %v291 = vpop.f32.mrf.mxu0
      %v292 = vadd.f32 %v182, %v291
      %293 = vmatmul.f32.gmra.mxu0 %v230
      %v294 = vpop.f32.mrf.mxu0
      %v295 = vadd.f32 %v182, %v294
      %296 = vdwg.mxu0
      %v297 = vmax.f32 %v250, 0.0
      %v298 = vmax.f32 %v253, 0.0
      %v299 = vmax.f32 %v256, 0.0
      %v300 = vmax.f32 %v259, 0.0
      %v301 = vmax.f32 %v262, 0.0
      %v302 = vmax.f32 %v265, 0.0
      %v303 = vmax.f32 %v268, 0.0
      %v304 = vmax.f32 %v271, 0.0
      %v305 = vmax.f32 %v274, 0.0
      %v306 = vmax.f32 %v277, 0.0
      %v307 = vmax.f32 %v280, 0.0
      %v308 = vmax.f32 %v283, 0.0
      %v309 = vmax.f32 %v286, 0.0
      %v310 = vmax.f32 %v289, 0.0
      %v311 = vmax.f32 %v292, 0.0
      %v312 = vmax.f32 %v295, 0.0
      %v313 = vperm.slane %v179, 0
      %314 = vmatpush.msra.mxu0 %v178
      %315 = vmatpush.msra.mxu0 %v177
      %316 = vmatpush.msra.mxu0 %v176
      %317 = vmatpush.msra.mxu0 %v175
      %318 = vmatpush.msra.mxu0 %v174
      %319 = vmatpush.msra.mxu0 %v173
      %320 = vmatpush.msra.mxu0 %v172
      %321 = vmatpush.msra.mxu0 %v171
      %322 = vmatpush.msra.mxu0 %v170
      %323 = vmatpush.msra.mxu0 %v169
      %324 = vmatpush.msra.mxu0 %v168
      %325 = vmatpush.msra.mxu0 %v167
      %326 = vmatpush.msra.mxu0 %v166
      %327 = vmatpush.msra.mxu0 %v165
      %328 = vmatpush.msra.mxu0 %v164
      %329 = vmatpush.msra.mxu0 %v163
      %330 = vmatmul.f32.gmra.mxu0 %v297
      %v331 = vpop.f32.mrf.mxu0
      %v332 = vadd.f32 %v313, %v331
      %333 = vmatmul.f32.gmra.mxu0 %v298
      %v334 = vpop.f32.mrf.mxu0
      %v335 = vadd.f32 %v313, %v334
      %336 = vmatmul.f32.gmra.mxu0 %v299
      %v337 = vpop.f32.mrf.mxu0
      %v338 = vadd.f32 %v313, %v337
      %339 = vmatmul.f32.gmra.mxu0 %v300
      %v340 = vpop.f32.mrf.mxu0
      %v341 = vadd.f32 %v313, %v340
      %342 = vmatmul.f32.gmra.mxu0 %v301
      %v343 = vpop.f32.mrf.mxu0
      %v344 = vadd.f32 %v313, %v343
      %345 = vmatmul.f32.gmra.mxu0 %v302
      %v346 = vpop.f32.mrf.mxu0
      %v347 = vadd.f32 %v313, %v346
      %348 = vmatmul.f32.gmra.mxu0 %v303
      %v349 = vpop.f32.mrf.mxu0
      %v350 = vadd.f32 %v313, %v349
      %351 = vmatmul.f32.gmra.mxu0 %v304
      %v352 = vpop.f32.mrf.mxu0
      %v353 = vadd.f32 %v313, %v352
      %354 = vmatmul.f32.gmra.mxu0 %v305
      %v355 = vpop.f32.mrf.mxu0
      %v356 = vadd.f32 %v313, %v355
      %357 = vmatmul.f32.gmra.mxu0 %v306
      %v358 = vpop.f32.mrf.mxu0
      %v359 = vadd.f32 %v313, %v358
      %360 = vmatmul.f32.gmra.mxu0 %v307
      %v361 = vpop.f32.mrf.mxu0
      %v362 = vadd.f32 %v313, %v361
      %363 = vmatmul.f32.gmra.mxu0 %v308
      %v364 = vpop.f32.mrf.mxu0
      %v365 = vadd.f32 %v313, %v364
      %366 = vmatmul.f32.gmra.mxu0 %v309
      %v367 = vpop.f32.mrf.mxu0
      %v368 = vadd.f32 %v313, %v367
      %369 = vmatmul.f32.gmra.mxu0 %v310
      %v370 = vpop.f32.mrf.mxu0
      %v371 = vadd.f32 %v313, %v370
      %372 = vmatmul.f32.gmra.mxu0 %v311
      %v373 = vpop.f32.mrf.mxu0
      %v374 = vadd.f32 %v313, %v373
      %375 = vmatmul.f32.gmra.mxu0 %v312
      %v376 = vpop.f32.mrf.mxu0
      %v377 = vadd.f32 %v313, %v376
      %378 = vdwg.mxu0
      %v379 = vmax.f32 %v332, 0.0
      %v380 = vmax.f32 %v335, 0.0
      %v381 = vmax.f32 %v338, 0.0
      %v382 = vmax.f32 %v341, 0.0
      %v383 = vmax.f32 %v344, 0.0
      %v384 = vmax.f32 %v347, 0.0
      %v385 = vmax.f32 %v350, 0.0
      %v386 = vmax.f32 %v353, 0.0
      %v387 = vmax.f32 %v356, 0.0
      %v388 = vmax.f32 %v359, 0.0
      %v389 = vmax.f32 %v362, 0.0
      %v390 = vmax.f32 %v365, 0.0
      %v391 = vmax.f32 %v368, 0.0
      %v392 = vmax.f32 %v371, 0.0
      %v393 = vmax.f32 %v374, 0.0
      %v394 = vmax.f32 %v377, 0.0
      %396 = vset.pattern.permute.xlu0 0
      %397 = vperm.xlu0 %396, %v181
      %v398 = vpop.permute.xlu0 %397
      %400 = vmatpush.xpose.msra.mxu0 %v394
      %401 = vmatpush.xpose.msra.mxu0 %v393
      %402 = vmatpush.xpose.msra.mxu0 %v392
      %403 = vmatpush.xpose.msra.mxu0 %v391
      %404 = vmatpush.xpose.msra.mxu0 %v390
      %405 = vmatpush.xpose.msra.mxu0 %v389
      %406 = vmatpush.xpose.msra.mxu0 %v388
      %407 = vmatpush.xpose.msra.mxu0 %v387
      %408 = vmatpush.xpose.msra.mxu0 %v386
      %409 = vmatpush.xpose.msra.mxu0 %v385
      %410 = vmatpush.xpose.msra.mxu0 %v384
      %411 = vmatpush.xpose.msra.mxu0 %v383
      %412 = vmatpush.xpose.msra.mxu0 %v382
      %413 = vmatpush.xpose.msra.mxu0 %v381
      %414 = vmatpush.xpose.msra.mxu0 %v380
      %415 = vmatpush.xpose.msra.mxu0 %v379
      %416 = vmatmul.f32.gmra.mxu0 %v180
      %v417 = vpop.f32.mrf.mxu0
      %v418 = vadd.f32 %v398, %v417
      %419 = vdwg.mxu0
      %420 = vst [vmem:[%s143] sm:$0xff] %v418
      %p421 = scmp.lt.s32.totalorder %s13, 1
      %s422 = scalar_select %p421, %s13, 1
      %s423 = smul.addr %s422, 8
      %s424 = scalar_lea.vmem %s2, %s423
      // Predicated region
      $region29: #{forward.1} parent=27 // pred_check
        %p425 = pneg %p78
      $region30: #{forward.1} parent=27 // pred_check_branch
        %427 = sbr.rel (%p425) target = $region32
      $region31: #{forward.1} parent=27 // pred_region
        _
      $region32: #{forward.1} parent=27 // pred_fallthru
        _
    $region28: #{forward.1} parent=5 // pred_fallthru
      _
    %p428 = scmp.le.s32.totalorder 2, %s8
    // Predicated region
    $region33: #{forward.1} parent=5 // pred_check
      %p429 = pneg %p428
    $region34: #{forward.1} parent=5 // pred_check_branch
      %431 = sbr.rel (%p429) target = $region36
    $region35: #{forward.1} parent=5 // pred_region
      %s432 = ssub.s32 %s8, 2
      // Predicated region
      $region37: #{forward.1} parent=35 // pred_check
        %p433 = pneg %p84
      $region38: #{forward.1} parent=35 // pred_check_branch
        %435 = sbr.rel (%p433) target = $region40
      $region39: #{forward.1} parent=35 // pred_region
        %p436 = scmp.lt.s32.totalorder %s14, 1
        %s437 = scalar_select %p436, %s14, 1
        %s438 = smul.addr %s437, 8
        %s439 = scalar_lea.vmem %s2, %s438
      $region40: #{forward.1} parent=35 // pred_fallthru
        _
    $region36: #{forward.1} parent=5 // pred_fallthru
      _
  $region6: #{forward.1} parent=0 // loop_footer
    %s12 = sadd.s32 1, %s8
  $region7: #{forward.1} parent=0 // loop_footer_branch
    %7 = sbr.rel target = $region3
  $region8: #{forward.1} parent=0 // loop_exit
    _

</llo_original>
